<compile_context>
chip_gen: v6e
topology: v6e:2x2x1
jax: 0.10.0
libtpu: 0.0.40
codegen_flags: <defaults>
</compile_context>

<pallas_src>
import jax
import jax.numpy as jnp
from jax import lax
from jax.experimental import pallas as pl
from jax.experimental.pallas import tpu as pltpu

_F32 = jnp.float32
_BF16 = jnp.bfloat16


# --------------------------------------------------------------------------- #
# small helpers
# --------------------------------------------------------------------------- #
def _mod(v, n):
    """v % n for int32 vectors, using bit ops when n is a power of two."""
    if n & (n - 1) == 0:
        return v & (n - 1)
    return v % n


def _div(v, n):
    """v // n for non-negative int32 vectors, shifts when n is a power of two."""
    if n & (n - 1) == 0:
        return v >> (int(n).bit_length() - 1)
    return v // n


def _stable_sigmoid(v):
    # exp of a non-positive argument only (no overflow for large |v|), exact divide.
    z = jnp.exp(-jnp.abs(v))
    inv = 1.0 / (1.0 + z)
    return jnp.where(v >= 0.0, inv, z * inv)


def _erf(z):
    # TODO(synk): swap for lax.erf once its Mosaic lowering is guaranteed;
    # Abramowitz & Stegun 7.1.26 (max abs err ~1.5e-7), exp routes to the EUP.
    a1, a2, a3 = 0.254829592, -0.284496736, 1.421413741
    a4, a5, p = -1.453152027, 1.061405429, 0.3275911
    s = jnp.where(z >= 0.0, 1.0, -1.0)
    za = jnp.abs(z)
    t = 1.0 / (1.0 + p * za)
    poly = ((((a5 * t + a4) * t + a3) * t + a2) * t + a1) * t
    return s * (1.0 - poly * jnp.exp(-za * za))


def _gelu(v):  # exact (erf-based) GELU, as nn.GELU() default
    return 0.5 * v * (1.0 + _erf(v * 0.7071067811865476))


def _tpu_vmem_capacity():
    try:
        return int(pltpu.get_tpu_info().vmem_capacity_bytes)
    except Exception:
        return 64 * 1024 * 1024        # conservative (v7x per-TensorCore VMEM)


def _vmem_limit_bytes():
    cap = _tpu_vmem_capacity()
    return int(min(cap * 0.75, 120 * 1024 * 1024))


def _pick_imgs_per_block(B, C, HW):
    """Whole images per grid block, sized to a generation-aware VMEM budget."""
    cap = _tpu_vmem_capacity()
    budget = int(cap * 0.40)           # headroom for double buffering + weights
    per_px = 48 * C + 512              # rough live bytes per pixel in the kernel
    imgs = max(1, budget // (per_px * HW))
    if B >= 2:
        imgs = min(imgs, (B + 1) // 2)  # keep >=2 blocks: pipelining + megacore
    imgs = min(imgs, B)
    for n in range(imgs, 0, -1):
        if B % n == 0 and (n * HW) % 128 == 0:
            return n
    # TODO(synk): spatial (row) tiling with a dilation-5 halo for images whose
    # footprint exceeds the VMEM budget; for now fall back to a single block.
    return B


def _stack_taps(w):
    """torch conv weight (Co, Ci, 3, 3) -> (Co, 9*Ci); column = t*Ci + ci."""
    co, ci, kh, kw = w.shape
    return jnp.transpose(w, (0, 2, 3, 1)).reshape(co, kh * kw * ci)


# --------------------------------------------------------------------------- #
# kernels
# --------------------------------------------------------------------------- #
def _make_pre_kernel(C, c_, Rb):
    """Per-block partial sums of sp = conv1x1(LN(x)[3c_:]) for the spatial BN."""

    def kernel(x_ref, cols_ref, wm_ref, st_ref):
        x = x_ref[...]                                          # (C, Rb) f32
        mean = jnp.mean(x, axis=0, keepdims=True)
        var = jnp.mean((x - mean) ** 2, axis=0, keepdims=True)
        g = cols_ref[3 * c_:, 0:1]
        b = cols_ref[3 * c_:, 1:2]
        yd = (x[3 * c_:] - mean) * lax.rsqrt(var + 1e-5) * g + b
        sp0 = jnp.sum(wm_ref[:, 0:1] * yd, axis=0, keepdims=True)   # (1, Rb)
        s1 = jnp.sum(sp0, axis=1, keepdims=True)
        s2 = jnp.sum(sp0 * sp0, axis=1, keepdims=True)
        st_ref[0] = jnp.concatenate(
            [s1, s2, jnp.zeros((1, 126), _F32)], axis=1)

    return kernel


def _make_main_kernel(C, c_, H, W, nimg, offs):
    HW = H * W
    Rb = nimg * HW
    OFF1, OFF2, OFF3, OFFC, OFF11 = offs

    def kernel(x_ref, ws_ref, wm_ref, cols_ref, spab_ref, sel_ref, selt_ref,
               o_ref, st_ref):
        x = x_ref[...]                                          # (C, Rb) f32
        cols = cols_ref[...]                                    # (C, 8)  f32
        g_ln, b_ln = cols[:, 0:1], cols[:, 1:2]
        b1, b2, b3 = cols[:c_, 2:3], cols[:c_, 3:4], cols[:c_, 4:5]
        b_dw, b11, b_c = cols[:c_, 5:6], cols[:c_, 6:7], cols[:, 7:8]

        # pixel coordinates within the block (whole images), built in-kernel.
        r = lax.broadcasted_iota(jnp.int32, (1, Rb), 1)
        ww = _mod(r, W)
        hh = _mod(_div(r, W), H)

        def shifted(v_bf, oy, ox):
            # v[:, r] -> v[:, r + oy*W + ox]; zero where the source pixel is
            # outside its image (this also kills the roll wrap-around, so
            # whole-image batch blocks need no halo, even at dilation 5).
            if oy == 0 and ox == 0:
                return v_bf
            off = oy * W + ox
            ok = ((hh + oy >= 0) & (hh + oy < H)
                  & (ww + ox >= 0) & (ww + ox < W))
            rolled = pltpu.roll(v_bf, shift=(-off) % Rb, axis=1)
            return jnp.where(ok, rolled, jnp.zeros_like(rolled))

        def conv3x3(inp_f32, wcol0, co, bias, dil, taps_per_chunk):
            # Shifted/masked copies of the INPUT stacked on sublanes, one bf16
            # MXU matmul per tap chunk with f32 accumulation (K = k*Ci).
            ci = inp_f32.shape[0]
            v = inp_f32.astype(_BF16)
            acc = None
            for t0 in range(0, 9, taps_per_chunk):
                t1 = min(t0 + taps_per_chunk, 9)
                stack = jnp.concatenate(
                    [shifted(v, (t // 3 - 1) * dil, (t % 3 - 1) * dil)
                     for t in range(t0, t1)], axis=0)
                wblk = ws_ref[0:co, wcol0 + t0 * ci: wcol0 + t1 * ci]
                part = jnp.dot(wblk, stack, preferred_element_type=_F32)
                acc = part if acc is None else acc + part
            return acc + bias

        # ---- LayerNorm2D over the channel dim (per pixel) --------------------
        mean = jnp.mean(x, axis=0, keepdims=True)
        var = jnp.mean((x - mean) ** 2, axis=0, keepdims=True)
        y = (x - mean) * lax.rsqrt(var + 1e-5) * g_ln + b_ln
        ya, yb, yc, yd = (y[i * c_:(i + 1) * c_] for i in range(4))

        # ---- dilated conv chain (concat members merged along K) --------------
        x1 = conv3x3(ya, OFF1, c_, b1, 1, 9)
        x2 = conv3x3(jnp.concatenate([x1, yb], axis=0), OFF2, c_, b2, 3, 9)
        x3 = conv3x3(jnp.concatenate([x2, yc], axis=0), OFF3, c_, b3, 5, 9)

        # ---- spatial attention gate (global BN stats folded into A, B) -------
        wsp = wm_ref[:, 0:1]                                    # (c_, 1)
        sp0 = jnp.sum(wsp * yd, axis=0, keepdims=True)          # (1, Rb)
        gate = _stable_sigmoid(sp0 * spab_ref[0:1, 0:1] + spab_ref[0:1, 1:2])
        x33 = gate * x3

        # ---- channel attention: pooled depthwise conv on the MXU -------------
        wdw = wm_ref[:, 1:10]                                   # (c_, 9)
        x3b = x3.astype(_BF16)
        sel = sel_ref[...]                                      # (Rb, nimg) bf16
        pooled = None
        for t in range(9):
            oy, ox = t // 3 - 1, t % 3 - 1
            if t == 4:
                xm = x3b
            else:
                okb = ((hh - oy >= 0) & (hh - oy < H)
                       & (ww - ox >= 0) & (ww - ox < W))
                xm = jnp.where(okb, x3b, jnp.zeros_like(x3b))
            p_t = wdw[:, t:t + 1] * jnp.dot(xm, sel,
                                            preferred_element_type=_F32)
            pooled = p_t if pooled is None else pooled + p_t
        pooled = pooled * (1.0 / HW) + b_dw                     # (c_, nimg)
        att = jnp.dot(_stable_sigmoid(pooled).astype(_BF16), selt_ref[...],
                      preferred_element_type=_F32)              # (c_, Rb)
        x44 = att * yd

        # ---- x4 = c11(cat(x33, x44)): 1x1 conv --------------------------------
        x4 = jnp.dot(ws_ref[0:c_, OFF11:OFF11 + 2 * c_],
                     jnp.concatenate([x33, x44], axis=0).astype(_BF16),
                     preferred_element_type=_F32) + b11

        # ---- out = c(cat(x1, x2, x3, x4)): 3x3, dilation 1 --------------------
        xo = conv3x3(jnp.concatenate([x1, x2, x3, x4], axis=0),
                     OFFC, C, b_c, 1, 3)

        o_ref[...] = xo
        # per-block partial sums for the training-mode BatchNorm epilogue
        s1 = jnp.sum(xo, axis=1, keepdims=True)                 # (C, 1)
        s2 = jnp.sum(xo * xo, axis=1, keepdims=True)
        st_ref[0] = jnp.concatenate(
            [s1, s2, jnp.zeros((C, 126), _F32)], axis=1)

    return kernel


def _make_epi_kernel(add):
    """BatchNorm affine (scale/shift precomputed) + GELU + optional residual."""
    if add:
        def kernel(xo_ref, x_ref, ss_ref, o_ref):
            v = xo_ref[...] * ss_ref[:, 0:1] + ss_ref[:, 1:2]
            o_ref[...] = _gelu(v) + x_ref[...]
    else:
        def kernel(xo_ref, ss_ref, o_ref):
            v = xo_ref[...] * ss_ref[:, 0:1] + ss_ref[:, 1:2]
            o_ref[...] = _gelu(v)
    return kernel


# --------------------------------------------------------------------------- #
# parameters & wrapper
# --------------------------------------------------------------------------- #
def init_params(key, c1, c2):
    c_ = int(c2 / 4)
    ks = jax.random.split(key, 14)

    def rnd(k, shape, scale=0.1):
        return scale * jax.random.normal(k, shape, dtype=_F32)

    return dict(
        ln_gamma=jnp.ones((c1,), _F32),
        ln_beta=jnp.zeros((c1,), _F32),
        w_c1=rnd(ks[0], (c_, c_, 3, 3)), b_c1=rnd(ks[1], (c_,)),
        w_c2=rnd(ks[2], (c_, 2 * c_, 3, 3)), b_c2=rnd(ks[3], (c_,)),
        w_c3=rnd(ks[4], (c_, 2 * c_, 3, 3)), b_c3=rnd(ks[5], (c_,)),
        w_sp=rnd(ks[6], (1, c_, 1, 1)), b_sp=rnd(ks[7], (1,)),
        g_sp=jnp.ones((1,), _F32), beta_sp=jnp.zeros((1,), _F32),
        w_dw=rnd(ks[8], (c_, 1, 3, 3)), b_dw=rnd(ks[9], (c_,)),
        w_c11=rnd(ks[10], (c_, 2 * c_, 1, 1)), b_c11=rnd(ks[11], (c_,)),
        w_c=rnd(ks[12], (c2, c1, 3, 3)), b_c=rnd(ks[13], (c2,)),
        g_bn=jnp.ones((c1,), _F32), b_bn=jnp.zeros((c1,), _F32),
    )


def fgmlfa_forward(x_nchw, params, c1, c2, shortcut=True):
    B, C, H, W = x_nchw.shape
    assert C == c1 and c2 == c1, "BN(c1) on c2-channel output requires c1 == c2"
    c_ = int(c2 / 4)
    add = shortcut and c1 == c2
    HW = H * W
    R = B * HW

    nimg = _pick_imgs_per_block(B, C, HW)
    nblk = B // nimg
    Rb = nimg * HW

    # ---- pack parameters into a few DMA-friendly blocks -----------------------
    p = params

    def cpad(v):
        z = jnp.zeros((C,), _F32)
        return z.at[:v.shape[0]].set(v.astype(_F32))

    cols = jnp.stack([cpad(p['ln_gamma']), cpad(p['ln_beta']),
                      cpad(p['b_c1']), cpad(p['b_c2']), cpad(p['b_c3']),
                      cpad(p['b_dw']), cpad(p['b_c11']), cpad(p['b_c'])],
                     axis=1)                                       # (C, 8) f32

    def rpad(w):                        # pad output channels up to C rows
        return jnp.pad(w, ((0, C - w.shape[0]), (0, 0)))

    segs = [rpad(_stack_taps(p['w_c1'])),          # c1 : (C, 9c_)
            rpad(_stack_taps(p['w_c2'])),          # c2 : (C, 18c_)
            rpad(_stack_taps(p['w_c3'])),          # c3 : (C, 18c_)
            _stack_taps(p['w_c']),                 # c  : (C, 9C)
            rpad(p['w_c11'][:, :, 0, 0])]          # c11: (C, 2c_)
    offs, blocks, off = [], [], 0
    for s in segs:                      # lane-align each segment to 128 cols
        offs.append(off)
        wpad = ((s.shape[1] + 127) // 128) * 128
        blocks.append(jnp.pad(s, ((0, 0), (0, wpad - s.shape[1]))))
        off += wpad
    wstack = jnp.concatenate(blocks, axis=1).astype(_BF16)         # (C, off) bf16

    wmisc = jnp.concatenate([p['w_sp'][0, :, 0, 0].reshape(c_, 1),
                             p['w_dw'][:, 0].reshape(c_, 9)],
                            axis=1).astype(_F32)                   # (c_, 10)

    # per-image pooling selectors (constant over the grid -> resident in VMEM)
    rloc = jnp.arange(Rb, dtype=jnp.int32) // HW
    sel = (rloc[:, None] == jnp.arange(nimg, dtype=jnp.int32)[None, :]
           ).astype(_BF16)                                         # (Rb, nimg)
    selt = jnp.transpose(sel)                                      # (nimg, Rb)

    # NCHW -> (C, R): channels on sublanes, pixels lane-dense.
    x_cr = jnp.transpose(x_nchw, (1, 0, 2, 3)).reshape(C, R).astype(_F32)

    cparams = pltpu.CompilerParams(
        dimension_semantics=("parallel",),
        vmem_limit_bytes=_vmem_limit_bytes())

    # ---- pass 1: partial sums for the spatial-attention BatchNorm(1) ----------
    spst = pl.pallas_call(
        _make_pre_kernel(C, c_, Rb),
        grid=(nblk,),
        in_specs=[pl.BlockSpec((C, Rb), lambda i: (0, i)),
                  pl.BlockSpec(cols.shape, lambda i: (0, 0)),
                  pl.BlockSpec(wmisc.shape, lambda i: (0, 0))],
        out_specs=pl.BlockSpec((1, 1, 128), lambda i: (i, 0, 0)),
        out_shape=jax.ShapeDtypeStruct((nblk, 1, 128), _F32),
        compiler_params=cparams,
    )(x_cr, cols, wmisc)
    s1 = jnp.sum(spst[:, 0, 0])
    s2 = jnp.sum(spst[:, 0, 1])
    sp_mean = s1 / R
    sp_var = s2 / R - sp_mean * sp_mean
    A = p['g_sp'].astype(_F32) * lax.rsqrt(sp_var + 1e-5)
    Bc = p['beta_sp'].astype(_F32) - sp_mean * A     # conv bias b_sp cancels in BN
    spab = jnp.concatenate([A.reshape(1, 1), Bc.reshape(1, 1)], axis=1)

    # ---- pass 2: main fused block (LN -> convs -> attentions -> conv c) -------
    xo, bnst = pl.pallas_call(
        _make_main_kernel(C, c_, H, W, nimg, tuple(offs)),
        grid=(nblk,),
        in_specs=[pl.BlockSpec((C, Rb), lambda i: (0, i)),
                  pl.BlockSpec(wstack.shape, lambda i: (0, 0)),
                  pl.BlockSpec(wmisc.shape, lambda i: (0, 0)),
                  pl.BlockSpec(cols.shape, lambda i: (0, 0)),
                  pl.BlockSpec(spab.shape, lambda i: (0, 0)),
                  pl.BlockSpec(sel.shape, lambda i: (0, 0)),
                  pl.BlockSpec(selt.shape, lambda i: (0, 0))],
        out_specs=[pl.BlockSpec((C, Rb), lambda i: (0, i)),
                   pl.BlockSpec((1, C, 128), lambda i: (i, 0, 0))],
        out_shape=[jax.ShapeDtypeStruct((C, R), _F32),
                   jax.ShapeDtypeStruct((nblk, C, 128), _F32)],
        compiler_params=cparams,
    )(x_cr, wstack, wmisc, cols, spab, sel, selt)

    S1 = jnp.sum(bnst[:, :, 0], axis=0)
    S2 = jnp.sum(bnst[:, :, 1], axis=0)
    mean = S1 / R
    var = S2 / R - mean * mean
    scale = p['g_bn'].astype(_F32) * lax.rsqrt(var + 1e-5)
    shift = p['b_bn'].astype(_F32) - mean * scale
    ss = jnp.stack([scale, shift], axis=1)                         # (C, 2)

    # ---- pass 3: BatchNorm affine + GELU + residual ----------------------------
    if add:
        epi_in = (xo, x_cr, ss)
        epi_specs = [pl.BlockSpec((C, Rb), lambda i: (0, i)),
                     pl.BlockSpec((C, Rb), lambda i: (0, i)),
                     pl.BlockSpec(ss.shape, lambda i: (0, 0))]
    else:
        epi_in = (xo, ss)
        epi_specs = [pl.BlockSpec((C, Rb), lambda i: (0, i)),
                     pl.BlockSpec(ss.shape, lambda i: (0, 0))]
    out_cr = pl.pallas_call(
        _make_epi_kernel(add),
        grid=(nblk,),
        in_specs=epi_specs,
        out_specs=pl.BlockSpec((C, Rb), lambda i: (0, i)),
        out_shape=jax.ShapeDtypeStruct((C, R), _F32),
        compiler_params=cparams,
    )(*epi_in)

    return jnp.transpose(out_cr.reshape(C, B, H, W), (1, 0, 2, 3))


if __name__ == "__main__":
    B, C, H, W = 2, 16, 16, 16        # NCHW input, c1 = c2 = 16, c_ = 4
    c1 = c2 = C
    key = jax.random.PRNGKey(0)
    kx, kp = jax.random.split(key)
    x = jax.random.normal(kx, (B, C, H, W), dtype=jnp.float32)
    params = init_params(kp, c1, c2)

    out = fgmlfa_forward(x, params, c1, c2, shortcut=True)
    out = jax.block_until_ready(out)
    assert out.shape == (B, c2, H, W)
    assert bool(jnp.all(jnp.isfinite(out)))
    print("KERNEL_OK")
</pallas_src>

<mosaic_0001>
module attributes {stable_mosaic.version = 11 : i64} {
  func.func @kernel(%arg0: i32, %arg1: memref<16x256xf32, #tpu.memory_space<vmem>>, %arg2: memref<16x8xf32, #tpu.memory_space<vmem>>, %arg3: memref<4x10xf32, #tpu.memory_space<vmem>>, %arg4: memref<1x1x128xf32, #tpu.memory_space<vmem>>) attributes {dimension_semantics = [#tpu.dimension_semantics<parallel>], iteration_bounds = array<i64: 2>, scalar_prefetch = 0 : i64, scratch_operands = 0 : i64, tpu.core_type = #tpu.core_type<tc>, window_params = [{transform_indices = @transform_0, window_bounds = array<i64: 16, 256>}, {pipeline_mode = #tpu.pipeline_mode<synchronous>, transform_indices = @transform_1, window_bounds = array<i64: 16, 8>}, {pipeline_mode = #tpu.pipeline_mode<synchronous>, transform_indices = @transform_2, window_bounds = array<i64: 4, 10>}, {transform_indices = @transform_3, window_bounds = array<i64: 1, 1, 128>}]} {
    %c0 = arith.constant 0 : index
    %c0_0 = arith.constant 0 : index
    %0 = vector.load %arg1[%c0, %c0_0] : memref<16x256xf32, #tpu.memory_space<vmem>>, vector<16x256xf32>
    %cst = arith.constant dense<0.000000e+00> : vector<256xf32>
    %1 = vector.multi_reduction <add>, %0, %cst [0] : vector<16x256xf32> to vector<256xf32>
    %2 = vector.shape_cast %1 : vector<256xf32> to vector<1x256xf32>
    %cst_1 = arith.constant 1.600000e+01 : f32
    %3 = vector.broadcast %cst_1 : f32 to vector<1x256xf32>
    %4 = arith.divf %2, %3 : vector<1x256xf32>
    %5 = vector.broadcast %4 : vector<1x256xf32> to vector<16x256xf32>
    %6 = arith.subf %0, %5 : vector<16x256xf32>
    %7 = arith.mulf %6, %6 : vector<16x256xf32>
    %cst_2 = arith.constant dense<0.000000e+00> : vector<256xf32>
    %8 = vector.multi_reduction <add>, %7, %cst_2 [0] : vector<16x256xf32> to vector<256xf32>
    %9 = vector.shape_cast %8 : vector<256xf32> to vector<1x256xf32>
    %cst_3 = arith.constant 1.600000e+01 : f32
    %10 = vector.broadcast %cst_3 : f32 to vector<1x256xf32>
    %11 = arith.divf %9, %10 : vector<1x256xf32>
    %c12 = arith.constant 12 : index
    %c0_4 = arith.constant 0 : index
    %12 = vector.load %arg2[%c12, %c0_4] : memref<16x8xf32, #tpu.memory_space<vmem>>, vector<4x1xf32>
    %c12_5 = arith.constant 12 : index
    %c1 = arith.constant 1 : index
    %13 = vector.load %arg2[%c12_5, %c1] : memref<16x8xf32, #tpu.memory_space<vmem>>, vector<4x1xf32>
    %14 = vector.extract_strided_slice %0 {offsets = [12, 0], sizes = [4, 256], strides = [1, 1]} : vector<16x256xf32> to vector<4x256xf32>
    %15 = vector.broadcast %4 : vector<1x256xf32> to vector<4x256xf32>
    %16 = arith.subf %14, %15 : vector<4x256xf32>
    %cst_6 = arith.constant 9.99999974E-6 : f32
    %17 = vector.broadcast %cst_6 : f32 to vector<1x256xf32>
    %18 = arith.addf %11, %17 : vector<1x256xf32>
    %19 = math.rsqrt %18 : vector<1x256xf32>
    %20 = vector.broadcast %19 : vector<1x256xf32> to vector<4x256xf32>
    %21 = arith.mulf %16, %20 : vector<4x256xf32>
    %22 = vector.broadcast %12 : vector<4x1xf32> to vector<4x256xf32>
    %23 = arith.mulf %21, %22 : vector<4x256xf32>
    %24 = vector.broadcast %13 : vector<4x1xf32> to vector<4x256xf32>
    %25 = arith.addf %23, %24 : vector<4x256xf32>
    %c0_7 = arith.constant 0 : index
    %c0_8 = arith.constant 0 : index
    %26 = vector.load %arg3[%c0_7, %c0_8] : memref<4x10xf32, #tpu.memory_space<vmem>>, vector<4x1xf32>
    %27 = vector.broadcast %26 : vector<4x1xf32> to vector<4x256xf32>
    %28 = arith.mulf %27, %25 : vector<4x256xf32>
    %cst_9 = arith.constant dense<0.000000e+00> : vector<256xf32>
    %29 = vector.multi_reduction <add>, %28, %cst_9 [0] : vector<4x256xf32> to vector<256xf32>
    %30 = vector.shape_cast %29 : vector<256xf32> to vector<1x256xf32>
    %cst_10 = arith.constant dense<0.000000e+00> : vector<1xf32>
    %31 = vector.multi_reduction <add>, %30, %cst_10 [1] : vector<1x256xf32> to vector<1xf32>
    %32 = vector.shape_cast %31 : vector<1xf32> to vector<1x1xf32>
    %33 = arith.mulf %30, %30 : vector<1x256xf32>
    %cst_11 = arith.constant dense<0.000000e+00> : vector<1xf32>
    %34 = vector.multi_reduction <add>, %33, %cst_11 [1] : vector<1x256xf32> to vector<1xf32>
    %35 = vector.shape_cast %34 : vector<1xf32> to vector<1x1xf32>
    %cst_12 = arith.constant 0.000000e+00 : f32
    %36 = vector.broadcast %cst_12 : f32 to vector<1x126xf32>
    %37 = tpu.concatenate %32, %35, %36 in 1 : vector<1x1xf32>, vector<1x1xf32>, vector<1x126xf32> -> vector<1x128xf32>
    %c0_13 = arith.constant 0 : index
    %c0_14 = arith.constant 0 : index
    %c0_15 = arith.constant 0 : index
    %38 = vector.load %arg4[%c0_13, %c0_14, %c0_15] : memref<1x1x128xf32, #tpu.memory_space<vmem>>, vector<1x1x128xf32>
    %39 = vector.shape_cast %38 : vector<1x1x128xf32> to vector<1x128xf32>
    %40 = vector.shape_cast %37 : vector<1x128xf32> to vector<1x1x128xf32>
    tpu.vector_store %arg4[%c0_13, %c0_14, %c0_15], %40 {strides = array<i32>} : memref<1x1x128xf32, #tpu.memory_space<vmem>>, vector<1x1x128xf32>,
    return
  }
  func.func @transform_0(%arg0: i32) -> (i32, i32) {
    %c0_i32 = arith.constant 0 : i32
    %c0_i32_0 = arith.constant 0 : i32
    return %c0_i32, %arg0 : i32, i32
  }
  func.func @transform_1(%arg0: i32) -> (i32, i32) {
    %c0_i32 = arith.constant 0 : i32
    %c0_i32_0 = arith.constant 0 : i32
    %c0_i32_1 = arith.constant 0 : i32
    return %c0_i32, %c0_i32_0 : i32, i32
  }
  func.func @transform_2(%arg0: i32) -> (i32, i32) {
    %c0_i32 = arith.constant 0 : i32
    %c0_i32_0 = arith.constant 0 : i32
    %c0_i32_1 = arith.constant 0 : i32
    return %c0_i32, %c0_i32_0 : i32, i32
  }
  func.func @transform_3(%arg0: i32) -> (i32, i32, i32) {
    %c0_i32 = arith.constant 0 : i32
    %c0_i32_0 = arith.constant 0 : i32
    %c0_i32_1 = arith.constant 0 : i32
    return %arg0, %c0_i32, %c0_i32_0 : i32, i32, i32
  }
}

</mosaic_0001>

<llo_original>
// kernel: tpu_custom_call.1
$region0: #{tpu_custom_call.1}
  #allocation0 [shape = 'u32[]', space=smem, size = 0x4, offset = 0x4, fixed_abs, tag = 'smem constant byte address 0x4 - core index']
  #allocation1 [shape = 'u32[144,128]{1,0:T(1,128)}', space=vmem, size = 0x12000, scoped, tag = 'internal scratch']
  %s0 = inlined_call_operand.hbm [shape: f32[16,512], index: 0, kind: input, shape index: {}]
  %s1 = inlined_call_operand.vmem [shape: f32[16,8], index: 1, kind: input, shape index: {}]
  %s2 = inlined_call_operand.vmem [shape: f32[4,10], index: 2, kind: input, shape index: {}]
  %s3 = inlined_call_operand.hbm [shape: f32[2,1,128], index: 3, kind: output, shape index: {}]
  %s4 = sld [smem:[#allocation0]]
  $region49: #{tpu_custom_call.1} parent=0
    _
  %s6 = ssub.s32 1, %s4
  %s7 = scalar_select 0, %s6, %s4
  $region1: #{tpu_custom_call.1} parent=0
    #allocation2 [shape = 'u8[32768]{0}', space=vmem, size = 0x8000, scoped, tag = 'input window, operand 0']
    #allocation3 [shape = 's32[2]{0}', space=sflag, size = 0x8, scoped, tag = 'scoped memory for tpu_custom_call.1']
    #allocation4 [shape = 's32[2]{0}', space=sflag, size = 0x8, scoped, tag = 'scoped memory for tpu_custom_call.1']
    #allocation5 [shape = 'u8[1024]{0}', space=vmem, size = 0x400, scoped, tag = 'output window, operand 0']
    %8 = vsyncpa [#allocation3], 0
    %s9 = scalar_lea.sflag [#allocation3], 1
    %10 = vsyncpa %s9, 0
    %11 = vsyncpa [#allocation4], 0
    %s12 = scalar_lea.sflag [#allocation4], 1
    %13 = vsyncpa %s12, 0
    loop: start=0, step=1, limit=4
    $region2: #{tpu_custom_call.1} parent=1 // loop_pre_header
      _
    $region3: #{tpu_custom_call.1} parent=1 // loop_header
      %s15 = sphi 0, %s19
      %p16 = scmp.ge.s32.totalorder %s15, 4
      %s25 = sphi 0, %s27
      %s28 = sphi 0, %s25
      %s29 = sphi 0, %s28
      %s45 = sphi 0, %s29
      %s49 = sphi 0, %s49
      %s51 = sphi 0, %s49
      %s52 = sphi 0, %s51
      %s66 = sphi 0, %s52
      %s70 = sphi 0, %s70
      %s72 = sphi 0, %s70
      %s73 = sphi 0, %s72
      %s87 = sphi 0, %s73
      %s93 = sphi 0, %s95
      %s96 = sphi 0, %s93
      %s97 = sphi 0, %s96
      %s113 = sphi 0, %s97
    $region4: #{tpu_custom_call.1} parent=1 // loop_header_branch
      %18 = sbr.rel (%p16) target = $region8
    $region5: #{tpu_custom_call.1} parent=1 // loop_body
      %s20 = ssub.s32 %s15, 1
      %s21 = ssub.s32 %s15, 2
      %s22 = sadd.s32 %s15, 1
      %s23 = ssub.s32 %s15, %s22
      %p24 = scmp.eq.s32.totalorder %s23, 0
      %s26 = sadd.s32 %s25, 1
      %s27 = scalar_select %p24, %s25, %s26
      %p30 = pneg %p24
      %p31 = scmp.eq.s32.totalorder %s15, 1
      %p32 = por %p30, %p31
      %p33 = scmp.ne.s32.totalorder %s25, %s28
      %p34 = scmp.eq.s32.totalorder %s15, 0
      %p35 = por %p33, %p34
      %p36 = scmp.ne.s32.totalorder %s25, %s28
      %p37 = scmp.eq.s32.totalorder %s20, 1
      %p38 = por %p36, %p37
      %p39 = scmp.ne.s32.totalorder %s28, %s29
      %p40 = scmp.eq.s32.totalorder %s20, 0
      %p41 = por %p39, %p40
      %p42 = scmp.ne.s32.totalorder %s28, %s29
      %p43 = scmp.eq.s32.totalorder %s21, 1
      %p44 = por %p42, %p43
      %p46 = scmp.ne.s32.totalorder %s29, %s45
      %p47 = scmp.eq.s32.totalorder %s21, 0
      %p48 = por %p46, %p47
      %s50 = sadd.s32 %s49, 1
      %p53 = scmp.eq.s32.totalorder %s15, 1
      %p54 = scmp.ne.s32.totalorder %s49, %s51
      %p55 = scmp.eq.s32.totalorder %s15, 0
      %p56 = por %p54, %p55
      %p57 = scmp.ne.s32.totalorder %s49, %s51
      %p58 = scmp.eq.s32.totalorder %s20, 1
      %p59 = por %p57, %p58
      %p60 = scmp.ne.s32.totalorder %s51, %s52
      %p61 = scmp.eq.s32.totalorder %s20, 0
      %p62 = por %p60, %p61
      %p63 = scmp.ne.s32.totalorder %s51, %s52
      %p64 = scmp.eq.s32.totalorder %s21, 1
      %p65 = por %p63, %p64
      %p67 = scmp.ne.s32.totalorder %s52, %s66
      %p68 = scmp.eq.s32.totalorder %s21, 0
      %p69 = por %p67, %p68
      %s71 = sadd.s32 %s70, 1
      %p74 = scmp.eq.s32.totalorder %s15, 1
      %p75 = scmp.ne.s32.totalorder %s70, %s72
      %p76 = scmp.eq.s32.totalorder %s15, 0
      %p77 = por %p75, %p76
      %p78 = scmp.ne.s32.totalorder %s70, %s72
      %p79 = scmp.eq.s32.totalorder %s20, 1
      %p80 = por %p78, %p79
      %p81 = scmp.ne.s32.totalorder %s72, %s73
      %p82 = scmp.eq.s32.totalorder %s20, 0
      %p83 = por %p81, %p82
      %p84 = scmp.ne.s32.totalorder %s72, %s73
      %p85 = scmp.eq.s32.totalorder %s21, 1
      %p86 = por %p84, %p85
      %p88 = scmp.ne.s32.totalorder %s73, %s87
      %p89 = scmp.eq.s32.totalorder %s21, 0
      %p90 = por %p88, %p89
      %s91 = ssub.s32 %s15, %s22
      %p92 = scmp.eq.s32.totalorder %s91, 0
      %s94 = sadd.s32 %s93, 1
      %s95 = scalar_select %p92, %s93, %s94
      %p98 = pneg %p92
      %p99 = scmp.eq.s32.totalorder %s15, 1
      %p100 = por %p98, %p99
      %p101 = scmp.ne.s32.totalorder %s93, %s96
      %p102 = scmp.eq.s32.totalorder %s15, 0
      %p103 = por %p101, %p102
      %p104 = scmp.ne.s32.totalorder %s93, %s96
      %p105 = scmp.eq.s32.totalorder %s20, 1
      %p106 = por %p104, %p105
      %p107 = scmp.ne.s32.totalorder %s96, %s97
      %p108 = scmp.eq.s32.totalorder %s20, 0
      %p109 = por %p107, %p108
      %p110 = scmp.ne.s32.totalorder %s96, %s97
      %p111 = scmp.eq.s32.totalorder %s21, 1
      %p112 = por %p110, %p111
      %p114 = scmp.ne.s32.totalorder %s97, %s113
      %p115 = scmp.eq.s32.totalorder %s21, 0
      %p116 = por %p114, %p115
      %p117 = scmp.le.s32.totalorder 1, %s15
      %p118 = scmp.lt.s32.totalorder %s15, 3
      %p119 = pnand %p117, %p118
      %p120 = pneg %p119
      // Predicated region
      $region9: #{tpu_custom_call.1} parent=5 // pred_check
        _
      $region10: #{tpu_custom_call.1} parent=5 // pred_check_branch
        %122 = sbr.rel (%p119) target = $region12
      $region11: #{tpu_custom_call.1} parent=5 // pred_region
        %s123 = ssub.s32 %s15, 1
        // Predicated region
        $region13: #{tpu_custom_call.1} parent=11 // pred_check
          %p124 = pneg %p62
        $region14: #{tpu_custom_call.1} parent=11 // pred_check_branch
          %126 = sbr.rel (%p124) target = $region16
        $region15: #{tpu_custom_call.1} parent=11 // pred_region
          _
        $region16: #{tpu_custom_call.1} parent=11 // pred_fallthru
          _
        // Predicated region
        $region17: #{tpu_custom_call.1} parent=11 // pred_check
          %p127 = pneg %p83
        $region18: #{tpu_custom_call.1} parent=11 // pred_check_branch
          %129 = sbr.rel (%p127) target = $region20
        $region19: #{tpu_custom_call.1} parent=11 // pred_region
          _
        $region20: #{tpu_custom_call.1} parent=11 // pred_fallthru
          _
      $region12: #{tpu_custom_call.1} parent=5 // pred_fallthru
        _
      %p130 = scmp.lt.s32.totalorder %s15, 2
      // Predicated region
      $region21: #{tpu_custom_call.1} parent=5 // pred_check
        %p131 = pneg %p130
      $region22: #{tpu_custom_call.1} parent=5 // pred_check_branch
        %133 = sbr.rel (%p131) target = $region24
      $region23: #{tpu_custom_call.1} parent=5 // pred_region
        // Predicated region
        $region25: #{tpu_custom_call.1} parent=23 // pred_check
          %p134 = pneg %p35
        $region26: #{tpu_custom_call.1} parent=23 // pred_check_branch
          %136 = sbr.rel (%p134) target = $region28
        $region27: #{tpu_custom_call.1} parent=23 // pred_region
          %s137 = sand.u32 %s25, 1
          %s138 = scalar_lea.sflag [#allocation3], %s137
          %s139 = sand.u32 %s25, 1
          %s140 = smul.addr %s139, 32
          %s141 = scalar_lea.vmem [#allocation2], %s140
          %s142 = smul.u32 2, %s15
          %s144 = ssub.s32 512, 512
          %145 = vsyncadd %s138, %s144
          %s146 = smul.addr %s142, 128
          %s147 = scalar_lea.hbm %s0, %s146
          %s148 = sshll.u32 %s141, 4
          %s149 = int_to_ptr.vmem [resolvable:$true] %s148
          %154 = dma.hbm_to_vmem [thread:$0]  %s147, 512, %s149, %s138, 512, 256, 16
        $region28: #{tpu_custom_call.1} parent=23 // pred_fallthru
          _
      $region24: #{tpu_custom_call.1} parent=5 // pred_fallthru
        _
      %p155 = scmp.le.s32.totalorder 1, %s15
      %p156 = scmp.lt.s32.totalorder %s15, 3
      %p157 = pnand %p155, %p156
      %p158 = pneg %p157
      // Predicated region
      $region29: #{tpu_custom_call.1} parent=5 // pred_check
        _
      $region30: #{tpu_custom_call.1} parent=5 // pred_check_branch
        %160 = sbr.rel (%p157) target = $region32
      $region31: #{tpu_custom_call.1} parent=5 // pred_region
        %s161 = ssub.s32 %s15, 1
        %s162 = sand.u32 %s28, 1
        %s163 = scalar_lea.sflag [#allocation3], %s162
        %s164 = sand.u32 %s28, 1
        %s165 = smul.addr %s164, 32
        %s166 = scalar_lea.vmem [#allocation2], %s165
        // Predicated region
        $region33: #{tpu_custom_call.1} parent=31 // pred_check
          %p167 = pneg %p41
        $region34: #{tpu_custom_call.1} parent=31 // pred_check_branch
          %169 = sbr.rel (%p167) target = $region36
        $region35: #{tpu_custom_call.1} parent=31 // pred_region
          %170 = dma.done %s163, 512
        $region36: #{tpu_custom_call.1} parent=31 // pred_fallthru
          _
        %s171 = sand.u32 %s28, 1
        %s172 = scalar_lea.sflag [#allocation3], %s171
        %s173 = sand.u32 %s28, 1
        %s174 = smul.addr %s173, 32
        %s175 = scalar_lea.vmem [#allocation2], %s174
        %p176 = pneg %p41
        %p177 = pneg %p38
        %p178 = pneg %p62
        %p179 = pneg %p59
        %p180 = pneg %p83
        %p181 = pneg %p80
        %p182 = pneg %p109
        %p183 = pneg %p106
        %s184 = sand.u32 %s96, 1
        %s185 = scalar_lea.sflag [#allocation4], %s184
        %s186 = sand.u32 %s96, 1
        %s187 = scalar_lea.vmem [#allocation5], %s186
        %s188 = smul.u32 2, %s20
        %v189 = vld [vmem:[%s166] sm:$0xff]
        %v190 = vld [vmem:[%s166 + $0x8] sm:$0xff]
        %v191 = vld [vmem:[%s166 + $0x10] sm:$0xff]
        %v192 = vld [vmem:[%s166 + $0x18] sm:$0xff]
        %v193 = vadd.f32 %v189, %v191
        %v194 = vrot.slane %v193, 4
        %v195 = vadd.f32 %v193, %v194
        %v196 = vrot.slane %v195, 2
        %v197 = vadd.f32 %v195, %v196
        %v198 = vrot.slane %v197, 1
        %v199 = vadd.f32 %v197, %v198
        %v200 = vadd.f32 %v190, %v192
        %v201 = vrot.slane %v200, 4
        %v202 = vadd.f32 %v200, %v201
        %v203 = vrot.slane %v202, 2
        %v204 = vadd.f32 %v202, %v203
        %v205 = vrot.slane %v204, 1
        %v206 = vadd.f32 %v204, %v205
        %v207 = vrcp.pop 16.0
        %v208 = vmul.f32 %v199, %v207
        %v209 = vmul.f32 %v206, %v207
        %v210 = vsub.f32 %v189, %v208
        %v211 = vsub.f32 %v190, %v209
        %v212 = vsub.f32 %v191, %v208
        %v213 = vsub.f32 %v192, %v209
        %v214 = vmul.f32 %v210, %v210
        %v215 = vmul.f32 %v211, %v211
        %v216 = vmul.f32 %v212, %v212
        %v217 = vmul.f32 %v213, %v213
        %v218 = vadd.f32 %v214, %v216
        %v219 = vrot.slane %v218, 4
        %v220 = vadd.f32 %v218, %v219
        %v221 = vrot.slane %v220, 2
        %v222 = vadd.f32 %v220, %v221
        %v223 = vrot.slane %v222, 1
        %v224 = vadd.f32 %v222, %v223
        %v225 = vadd.f32 %v215, %v217
        %v226 = vrot.slane %v225, 4
        %v227 = vadd.f32 %v225, %v226
        %v228 = vrot.slane %v227, 2
        %v229 = vadd.f32 %v227, %v228
        %v230 = vrot.slane %v229, 1
        %v231 = vadd.f32 %v229, %v230
        %v232 = vmul.f32 %v224, %v207
        %v233 = vmul.f32 %v231, %v207
        %v234 = vld [vmem:[%s1 + $0xc] sm:$0xf]
        %v235 = vadd.f32 %v232, 1e-05
        %v236 = vadd.f32 %v233, 1e-05
        %v237 = vrsqrt.pop %v235
        %v238 = vrsqrt.pop %v236
        %v239 = vmul.f32 %v212, %v237
        %v240 = vmul.f32 %v213, %v238
        %242 = vset.pattern.permute.xlu0 0
        %243 = vperm.xlu0 %242, %v234
        %v244 = vpop.permute.xlu0 %243
        %v245 = vrot.slane %v244, 4
        %v247 = vmul.f32 %v239, %v245
        %v248 = vmul.f32 %v240, %v245
        %249 = vset.pattern.permute.xlu0 1
        %250 = vperm.xlu0 %249, %v234
        %v251 = vpop.permute.xlu0 %250
        %v252 = vrot.slane %v251, 4
        %v254 = vadd.f32 %v247, %v252
        %v255 = vadd.f32 %v248, %v252
        %v256 = vld [vmem:[%s2] sm:$0xf]
        %258 = vset.pattern.permute.xlu0 0
        %259 = vperm.xlu0 %258, %v256
        %v260 = vpop.permute.xlu0 %259
        %v264 = vrot.slane %v254, 4
        %v265 = vrot.slane %v255, 4
        %v268 = vmul.f32 %v260, %v264
        %v269 = vmul.f32 %v260, %v265
        %vm270 = vcmask 1043456
        %v271 = vsel %vm270, %v268, 0.0
        %v272 = vrot.slane %v271, 4
        %v273 = vadd.f32 %v271, %v272
        %v274 = vrot.slane %v273, 2
        %v275 = vadd.f32 %v273, %v274
        %v276 = vrot.slane %v275, 1
        %v277 = vadd.f32 %v275, %v276
        %v278 = vsel %vm270, %v269, 0.0
        %v279 = vrot.slane %v278, 4
        %v280 = vadd.f32 %v278, %v279
        %v281 = vrot.slane %v280, 2
        %v282 = vadd.f32 %v280, %v281
        %v283 = vrot.slane %v282, 1
        %v284 = vadd.f32 %v282, %v283
        %v285 = vadd.f32 %v277, %v284
        %286 = vadd.xlane.f32.xlu0 %v285
        %v287 = vpop.xlane.xlu0 %286
        %v288 = vmul.f32 %v277, %v277
        %v289 = vmul.f32 %v284, %v284
        %v290 = vadd.f32 %v288, %v289
        %291 = vadd.xlane.f32.xlu0 %v290
        %v292 = vpop.xlane.xlu0 %291
        %vm293 = vcmask 7168
        %v294 = vsel %vm293, %v287, %v292
        %vm295 = vcmask 15360
        %v296 = vsel %vm295, %v294, 0.0
        %297 = vst [vmem:[%s187] sm:$0x1] %v296
        %s298 = sand.u32 %s96, 1
        %s299 = scalar_lea.sflag [#allocation4], %s298
        %s300 = sand.u32 %s96, 1
        %s301 = scalar_lea.vmem [#allocation5], %s300
        // Predicated region
        $region37: #{tpu_custom_call.1} parent=31 // pred_check
          %p302 = pneg %p106
        $region38: #{tpu_custom_call.1} parent=31 // pred_check_branch
          %304 = sbr.rel (%p302) target = $region40
        $region39: #{tpu_custom_call.1} parent=31 // pred_region
          %s306 = ssub.s32 16, 16
          %307 = vsyncadd %s299, %s306
          %s308 = smul.addr %s20, 16
          %s309 = scalar_lea.hbm %s3, %s308
          %s311 = sshll.u32 %s301, 4
          %s312 = int_to_ptr.vmem [resolvable:$true] %s311
          %314 = dma.vmem_to_hbm [thread:$0]  %s312, 16, %s309, %s299
        $region40: #{tpu_custom_call.1} parent=31 // pred_fallthru
          _
      $region32: #{tpu_custom_call.1} parent=5 // pred_fallthru
        _
      %p315 = scmp.le.s32.totalorder 2, %s15
      // Predicated region
      $region41: #{tpu_custom_call.1} parent=5 // pred_check
        %p316 = pneg %p315
      $region42: #{tpu_custom_call.1} parent=5 // pred_check_branch
        %318 = sbr.rel (%p316) target = $region44
      $region43: #{tpu_custom_call.1} parent=5 // pred_region
        %s319 = ssub.s32 %s15, 2
        // Predicated region
        $region45: #{tpu_custom_call.1} parent=43 // pred_check
          %p320 = pneg %p112
        $region46: #{tpu_custom_call.1} parent=43 // pred_check_branch
          %322 = sbr.rel (%p320) target = $region48
        $region47: #{tpu_custom_call.1} parent=43 // pred_region
          %s323 = sand.u32 %s97, 1
          %s324 = scalar_lea.sflag [#allocation4], %s323
          %s325 = sand.u32 %s97, 1
          %s326 = scalar_lea.vmem [#allocation5], %s325
          %327 = dma.done %s324, 16
        $region48: #{tpu_custom_call.1} parent=43 // pred_fallthru
          _
      $region44: #{tpu_custom_call.1} parent=5 // pred_fallthru
        _
    $region6: #{tpu_custom_call.1} parent=1 // loop_footer
      %s19 = sadd.s32 1, %s15
    $region7: #{tpu_custom_call.1} parent=1 // loop_footer_branch
      %14 = sbr.rel target = $region3
    $region8: #{tpu_custom_call.1} parent=1 // loop_exit
      _
    %328 = vsyncpa [#allocation3], 1
    %s329 = scalar_lea.sflag [#allocation3], 1
    %330 = vsyncpa %s329, 1
    %331 = vsyncpa [#allocation4], 1
    %s332 = scalar_lea.sflag [#allocation4], 1
    %333 = vsyncpa %s332, 1

</llo_original>
